<compile_context>
chip_gen: v7x
topology: tpu7x:2x2x1
jax: 0.10.0
libtpu: 0.0.40
codegen_flags: <defaults>
</compile_context>

<pallas_src>
import functools

import jax
import jax.numpy as jnp
from jax import lax
from jax.experimental import pallas as pl
from jax.experimental.pallas import tpu as pltpu


# Per-grid-step budget for the *double-buffered, tile-padded* (input + output) VMEM
# footprint.  ~8 MiB of live blocks per step (16 MiB double-buffered) makes the
# ~0.35us/step overhead negligible even at v7x's 3.2 TB/s, and still fits every
# generation (v7x: 64 MiB physical per TC) once the scoped limit is raised explicitly.
_VMEM_STEP_BUDGET = 16 << 20


def _sublane(dtype):
    # Sublane granularity of the (sublane, lane) tile: 8 (32-bit), 16 (bf16), 32 (int8).
    return max(8, 32 // jnp.dtype(dtype).itemsize)


def _padded_bytes(shape, dtype):
    """VMEM bytes of one block after (sublane, lane) tile padding of the minor two dims."""
    s = list(shape)
    s[-1] = -(-s[-1] // 128) * 128
    if len(s) >= 2:
        sub = _sublane(dtype)
        s[-2] = -(-s[-2] // sub) * sub
    n = 1
    for d in s:
        n *= d
    return n * jnp.dtype(dtype).itemsize


def _pick_channel_block(num_groups, batch, in_bytes_per_group, out_bytes_per_group,
                        budget=_VMEM_STEP_BUDGET):
    """Largest channel-group block (a divisor of num_groups) whose double-buffered,
    padded (in + out) footprint fits `budget`, then capped so the grid keeps enough
    steps for both v7x TensorCores (harmless on single-TC v5e/v6e)."""
    per_group = 2 * (in_bytes_per_group + out_bytes_per_group)   # x2: double buffering
    cb = int(max(1, min(num_groups, budget // max(per_group, 1))))
    while num_groups % cb:
        cb -= 1
    target_steps = min(4, batch * num_groups)
    while batch * (num_groups // cb) < target_steps and cb > 1:
        cb -= 1
        while num_groups % cb:
            cb -= 1
    return cb, per_group * cb


def _compiler_params(step_footprint_bytes):
    # Explicit scoped-VMEM limit sized from the padded, double-buffered footprint
    # (+ headroom for Mosaic-internal scratch).  Floor 32 MiB (v5e default is only 16),
    # ceiling 60 MiB (stay inside v7x's 64 MiB physical VMEM per core).
    limit = int(min(max(step_footprint_bytes + (8 << 20), 32 << 20), 60 << 20))
    return pltpu.CompilerParams(
        dimension_semantics=("parallel", "parallel"),
        vmem_limit_bytes=limit,
    )


def _check_dtype(dtype):
    if not jnp.issubdtype(jnp.dtype(dtype), jnp.floating):
        # TODO(synk): integer/quantized inputs need a VPU bitcast/shift de-interleave
        # (v7x's MXU has no integer datapath); the selector-matmul path is float-only.
        raise NotImplementedError("squeeze kernel currently supports floating dtypes only")
    # TODO(synk): for bf16/int8 verify the stride-2 sublane access does not lower to
    # per-row unpack/repack (packed rows share a sublane); if it does, switch the row
    # de-interleave to a pltpu.bitcast-of-row-pairs path.


# ---------------------------------------------------------------------------
# Forward (rev=False)
# ---------------------------------------------------------------------------
def _squeeze_fwd_kernel(x_ref, o_ref, *, H, W, Cb):
    # x_ref: (Cb, H, W)   o_ref: (Cb, 4, H//2, W//2)
    # out[c, 2i + j, h, w] == x[c, 2h + i, 2w + j]
    H2, W2 = H // 2, W // 2
    dt = x_ref.dtype

    # Fused 0/1 column-de-interleave selector, built in-kernel (no extra input stream):
    #   sel[k, c] = 1  iff  k == 2*(c - j*W2) + j   with   j = (c >= W2)
    # so (x @ sel) places the even input columns in output lanes [0, W2) and the odd
    # ones in [W2, W): both column parities in a single MXU pass per row parity.
    rows = lax.broadcasted_iota(jnp.int32, (W, W), 0)
    cols = lax.broadcasted_iota(jnp.int32, (W, W), 1)
    j = (cols >= W2).astype(jnp.int32)
    sel = (rows == 2 * (cols - j * W2) + j).astype(dt)

    # f32 inputs must reach the accumulator at full precision for the 0/1-selector
    # trick to stay bit-exact (a single bf16 MXU pass truncates mantissas).
    prec = lax.Precision.HIGHEST if dt == jnp.float32 else lax.Precision.DEFAULT

    for i in range(2):
        # Row (sublane) de-interleave via strided sublane load: rows i, i+2, ...
        xi = x_ref[:, pl.ds(i, H2, stride=2), :]                 # (Cb, H2, W)
        # Free reshape when H2 is a multiple of the sublane granularity (8 for f32).
        xi2 = xi.reshape(Cb * H2, W)
        y = jnp.dot(xi2, sel, preferred_element_type=jnp.float32, precision=prec)
        y = y.astype(dt)                                          # (Cb*H2, W)
        o_ref[:, 2 * i + 0, :, :] = y[:, :W2].reshape(Cb, H2, W2)
        o_ref[:, 2 * i + 1, :, :] = y[:, W2:].reshape(Cb, H2, W2)


def squeeze_forward(x):
    B, C, H, W = x.shape
    assert H % 2 == 0 and W % 2 == 0, "Squeeze needs even spatial dims"
    _check_dtype(x.dtype)
    H2, W2 = H // 2, W // 2
    itemsize = jnp.dtype(x.dtype).itemsize

    in_pg = _padded_bytes((H, W), x.dtype)            # padded per-channel input block
    out_pg = _padded_bytes((4, H2, W2), x.dtype)      # padded per-channel output block
    Cb, footprint = _pick_channel_block(C, B, in_pg, out_pg)

    kernel = functools.partial(_squeeze_fwd_kernel, H=H, W=W, Cb=Cb)
    cost = pl.CostEstimate(flops=2 * B * C * H * W * W, transcendentals=0,
                           bytes_accessed=2 * B * C * H * W * itemsize)
    out5 = pl.pallas_call(
        kernel,
        out_shape=jax.ShapeDtypeStruct((B, C, 4, H2, W2), x.dtype),
        grid_spec=pltpu.PrefetchScalarGridSpec(
            num_scalar_prefetch=0,
            grid=(B, C // Cb),
            in_specs=[pl.BlockSpec((None, Cb, H, W), lambda b, g: (b, g, 0, 0))],
            out_specs=pl.BlockSpec((None, Cb, 4, H2, W2),
                                   lambda b, g: (b, g, 0, 0, 0)),
        ),
        compiler_params=_compiler_params(footprint),
        cost_estimate=cost,
    )(x)
    # (B, C, 4, H2, W2) and (B, 4C, H2, W2) share the same contiguous layout: free reshape.
    return out5.reshape(B, 4 * C, H2, W2)


# ---------------------------------------------------------------------------
# Reverse (rev=True)
# ---------------------------------------------------------------------------
def _squeeze_rev_kernel(z_ref, o_ref, *, H, W, Cb):
    # z_ref: (Cb, 4, H, W) with local channel 2i + j   o_ref: (Cb, 2H, 2W)
    # out[c, 2h + i, 2w + j] == z[c, 2i + j, h, w]
    dt = z_ref.dtype
    W2 = 2 * W

    # 0/1 lane-scatter matrices, built in-kernel: scat_j[w, 2w + j] = 1.
    rows = lax.broadcasted_iota(jnp.int32, (W, W2), 0)
    cols = lax.broadcasted_iota(jnp.int32, (W, W2), 1)
    scat0 = (cols == 2 * rows).astype(dt)
    scat1 = (cols == 2 * rows + 1).astype(dt)

    prec = lax.Precision.HIGHEST if dt == jnp.float32 else lax.Precision.DEFAULT

    for i in range(2):
        # Free reshapes when H is a multiple of the sublane granularity.
        z0 = z_ref[:, 2 * i + 0, :, :].reshape(Cb * H, W)
        z1 = z_ref[:, 2 * i + 1, :, :].reshape(Cb * H, W)
        # Lane interleave on the MXU; the two contributions are lane-disjoint, so one
        # cheap VPU add merges them (already full lane width -> nothing to gain from a
        # fused lane-concat in this HBM-bound kernel).
        t = (jnp.dot(z0, scat0, preferred_element_type=jnp.float32, precision=prec)
             + jnp.dot(z1, scat1, preferred_element_type=jnp.float32, precision=prec))
        # Strided sublane store to rows i, i+2, ...  (no (2H, 2W) accumulator)
        o_ref[:, pl.ds(i, H, stride=2), :] = t.astype(dt).reshape(Cb, H, W2)


def squeeze_reverse(z):
    B, C, H, W = z.shape
    assert C % 4 == 0, "Unsqueeze needs channels divisible by 4"
    _check_dtype(z.dtype)
    G = C // 4
    itemsize = jnp.dtype(z.dtype).itemsize

    in_pg = _padded_bytes((4, H, W), z.dtype)
    out_pg = _padded_bytes((2 * H, 2 * W), z.dtype)
    Cb, footprint = _pick_channel_block(G, B, in_pg, out_pg)

    # Free bitcast view: channel 4c + 2i + j  ->  [c, 2i + j]
    z5 = z.reshape(B, G, 4, H, W)
    kernel = functools.partial(_squeeze_rev_kernel, H=H, W=W, Cb=Cb)
    cost = pl.CostEstimate(flops=2 * B * C * H * W * 2 * W, transcendentals=0,
                           bytes_accessed=2 * B * C * H * W * itemsize)
    return pl.pallas_call(
        kernel,
        out_shape=jax.ShapeDtypeStruct((B, G, 2 * H, 2 * W), z.dtype),
        grid_spec=pltpu.PrefetchScalarGridSpec(
            num_scalar_prefetch=0,
            grid=(B, G // Cb),
            in_specs=[pl.BlockSpec((None, Cb, 4, H, W), lambda b, g: (b, g, 0, 0, 0))],
            out_specs=pl.BlockSpec((None, Cb, 2 * H, 2 * W), lambda b, g: (b, g, 0, 0)),
        ),
        compiler_params=_compiler_params(footprint),
        cost_estimate=cost,
    )(z5)


# Module-like wrapper mirroring Squeeze.forward(x, rev)
def squeeze(x, rev: bool):
    return squeeze_reverse(x) if rev else squeeze_forward(x)


# ---------------------------------------------------------------------------
# Pure-JAX references (for correctness checking only)
# ---------------------------------------------------------------------------
def _ref_forward(x):
    B, C, H, W = x.shape
    x = x.reshape(B, C, H // 2, 2, W // 2, 2)
    x = jnp.transpose(x, (0, 1, 3, 5, 2, 4))
    return x.reshape(B, 4 * C, H // 2, W // 2)


def _ref_reverse(x):
    B, C, H, W = x.shape
    x = x.reshape(B, C // 4, 2, 2, H, W)
    x = jnp.transpose(x, (0, 1, 4, 2, 5, 3))
    return x.reshape(B, C // 4, 2 * H, 2 * W)


if __name__ == "__main__":
    key = jax.random.PRNGKey(0)
    x = jax.random.normal(key, (2, 4, 16, 16), dtype=jnp.float32)

    # Forward (rev=False): (2, 4, 16, 16) -> (2, 16, 8, 8)
    y = squeeze(x, rev=False)
    jax.block_until_ready(y)
    assert y.shape == (2, 16, 8, 8), y.shape
    assert jnp.allclose(y, _ref_forward(x), atol=1e-5, rtol=1e-5), "forward mismatch"

    # Reverse (rev=True): (2, 16, 8, 8) -> (2, 4, 16, 16); must invert forward.
    x_back = squeeze(y, rev=True)
    jax.block_until_ready(x_back)
    assert x_back.shape == x.shape, x_back.shape
    assert jnp.allclose(x_back, _ref_reverse(y), atol=1e-5, rtol=1e-5), "reverse mismatch"
    assert jnp.allclose(x_back, x, atol=1e-5, rtol=1e-5), "roundtrip mismatch"

    print("KERNEL_OK")
</pallas_src>

<mosaic_0001>
module attributes {stable_mosaic.version = 11 : i64} {
  func.func @_squeeze_fwd_kernel(%arg0: i32, %arg1: i32, %arg2: memref<1x2x16x16xf32, #tpu.memory_space<vmem>>, %arg3: memref<1x2x4x8x8xf32, #tpu.memory_space<vmem>>) attributes {dimension_semantics = [#tpu.dimension_semantics<parallel>, #tpu.dimension_semantics<parallel>], iteration_bounds = array<i64: 2, 2>, scalar_prefetch = 0 : i64, scratch_operands = 0 : i64, tpu.core_type = #tpu.core_type<tc>, window_params = [{transform_indices = @transform_0, window_bounds = array<i64: 1, 2, 16, 16>}, {transform_indices = @transform_1, window_bounds = array<i64: 1, 2, 4, 8, 8>}]} {
    %0 = tpu.iota {dimensions = array<i32: 0>} : vector<16x16xi32>
    %1 = tpu.iota {dimensions = array<i32: 1>} : vector<16x16xi32>
    %c8_i32 = arith.constant 8 : i32
    %2 = vector.broadcast %c8_i32 : i32 to vector<16x16xi32>
    %3 = arith.cmpi sge, %1, %2 : vector<16x16xi32>
    %4 = arith.extui %3 : vector<16x16xi1> to vector<16x16xi32>
    %c8_i32_0 = arith.constant 8 : i32
    %5 = vector.broadcast %c8_i32_0 : i32 to vector<16x16xi32>
    %6 = arith.muli %4, %5 : vector<16x16xi32>
    %7 = arith.subi %1, %6 : vector<16x16xi32>
    %c2_i32 = arith.constant 2 : i32
    %8 = vector.broadcast %c2_i32 : i32 to vector<16x16xi32>
    %9 = arith.muli %8, %7 : vector<16x16xi32>
    %10 = arith.addi %9, %4 : vector<16x16xi32>
    %11 = arith.cmpi eq, %0, %10 : vector<16x16xi32>
    %12 = arith.extui %11 : vector<16x16xi1> to vector<16x16xi32>
    %13 = arith.sitofp %12 : vector<16x16xi32> to vector<16x16xf32>
    %c0 = arith.constant 0 : index
    %c0_1 = arith.constant 0 : index
    %c0_2 = arith.constant 0 : index
    %c0_3 = arith.constant 0 : index
    %14 = tpu.strided_load %arg2[%c0, %c0_1, %c0_2, %c0_3] {strides = array<i32: 1, 1, 2, 1>} : memref<1x2x16x16xf32, #tpu.memory_space<vmem>>, vector<1x2x8x16xf32>
    %15 = vector.shape_cast %14 : vector<1x2x8x16xf32> to vector<2x8x16xf32>
    %16 = vector.shape_cast %15 : vector<2x8x16xf32> to vector<16x16xf32>
    %cst = arith.constant dense<0.000000e+00> : vector<16x16xf32>
    %17 = tpu.matmul %16, %13, %cst {dimension_numbers = #tpu.dot_dimension_numbers<[1], [0], [0], [1], [0, 0, 1, 1], [], []>, precision = #tpu.contract_precision<fp32>} : vector<16x16xf32>, vector<16x16xf32>, vector<16x16xf32> -> vector<16x16xf32>
    %18 = vector.extract_strided_slice %17 {offsets = [0, 0], sizes = [16, 8], strides = [1, 1]} : vector<16x16xf32> to vector<16x8xf32>
    %19 = vector.shape_cast %18 : vector<16x8xf32> to vector<2x8x8xf32>
    %c0_4 = arith.constant 0 : index
    %c0_5 = arith.constant 0 : index
    %c0_6 = arith.constant 0 : index
    %c0_7 = arith.constant 0 : index
    %c0_8 = arith.constant 0 : index
    %20 = vector.load %arg3[%c0_4, %c0_5, %c0_6, %c0_7, %c0_8] : memref<1x2x4x8x8xf32, #tpu.memory_space<vmem>>, vector<1x2x1x8x8xf32>
    %21 = vector.shape_cast %20 : vector<1x2x1x8x8xf32> to vector<2x8x8xf32>
    %22 = vector.shape_cast %19 : vector<2x8x8xf32> to vector<1x2x1x8x8xf32>
    tpu.vector_store %arg3[%c0_4, %c0_5, %c0_6, %c0_7, %c0_8], %22 {strides = array<i32>} : memref<1x2x4x8x8xf32, #tpu.memory_space<vmem>>, vector<1x2x1x8x8xf32>,
    %23 = vector.extract_strided_slice %17 {offsets = [0, 8], sizes = [16, 8], strides = [1, 1]} : vector<16x16xf32> to vector<16x8xf32>
    %24 = vector.shape_cast %23 : vector<16x8xf32> to vector<2x8x8xf32>
    %c0_9 = arith.constant 0 : index
    %c0_10 = arith.constant 0 : index
    %c1 = arith.constant 1 : index
    %c0_11 = arith.constant 0 : index
    %c0_12 = arith.constant 0 : index
    %25 = vector.load %arg3[%c0_9, %c0_10, %c1, %c0_11, %c0_12] : memref<1x2x4x8x8xf32, #tpu.memory_space<vmem>>, vector<1x2x1x8x8xf32>
    %26 = vector.shape_cast %25 : vector<1x2x1x8x8xf32> to vector<2x8x8xf32>
    %27 = vector.shape_cast %24 : vector<2x8x8xf32> to vector<1x2x1x8x8xf32>
    tpu.vector_store %arg3[%c0_9, %c0_10, %c1, %c0_11, %c0_12], %27 {strides = array<i32>} : memref<1x2x4x8x8xf32, #tpu.memory_space<vmem>>, vector<1x2x1x8x8xf32>,
    %c0_13 = arith.constant 0 : index
    %c0_14 = arith.constant 0 : index
    %c1_15 = arith.constant 1 : index
    %c0_16 = arith.constant 0 : index
    %28 = tpu.strided_load %arg2[%c0_13, %c0_14, %c1_15, %c0_16] {strides = array<i32: 1, 1, 2, 1>} : memref<1x2x16x16xf32, #tpu.memory_space<vmem>>, vector<1x2x8x16xf32>
    %29 = vector.shape_cast %28 : vector<1x2x8x16xf32> to vector<2x8x16xf32>
    %30 = vector.shape_cast %29 : vector<2x8x16xf32> to vector<16x16xf32>
    %cst_17 = arith.constant dense<0.000000e+00> : vector<16x16xf32>
    %31 = tpu.matmul %30, %13, %cst_17 {dimension_numbers = #tpu.dot_dimension_numbers<[1], [0], [0], [1], [0, 0, 1, 1], [], []>, precision = #tpu.contract_precision<fp32>} : vector<16x16xf32>, vector<16x16xf32>, vector<16x16xf32> -> vector<16x16xf32>
    %32 = vector.extract_strided_slice %31 {offsets = [0, 0], sizes = [16, 8], strides = [1, 1]} : vector<16x16xf32> to vector<16x8xf32>
    %33 = vector.shape_cast %32 : vector<16x8xf32> to vector<2x8x8xf32>
    %c0_18 = arith.constant 0 : index
    %c0_19 = arith.constant 0 : index
    %c2 = arith.constant 2 : index
    %c0_20 = arith.constant 0 : index
    %c0_21 = arith.constant 0 : index
    %34 = vector.load %arg3[%c0_18, %c0_19, %c2, %c0_20, %c0_21] : memref<1x2x4x8x8xf32, #tpu.memory_space<vmem>>, vector<1x2x1x8x8xf32>
    %35 = vector.shape_cast %34 : vector<1x2x1x8x8xf32> to vector<2x8x8xf32>
    %36 = vector.shape_cast %33 : vector<2x8x8xf32> to vector<1x2x1x8x8xf32>
    tpu.vector_store %arg3[%c0_18, %c0_19, %c2, %c0_20, %c0_21], %36 {strides = array<i32>} : memref<1x2x4x8x8xf32, #tpu.memory_space<vmem>>, vector<1x2x1x8x8xf32>,
    %37 = vector.extract_strided_slice %31 {offsets = [0, 8], sizes = [16, 8], strides = [1, 1]} : vector<16x16xf32> to vector<16x8xf32>
    %38 = vector.shape_cast %37 : vector<16x8xf32> to vector<2x8x8xf32>
    %c0_22 = arith.constant 0 : index
    %c0_23 = arith.constant 0 : index
    %c3 = arith.constant 3 : index
    %c0_24 = arith.constant 0 : index
    %c0_25 = arith.constant 0 : index
    %39 = vector.load %arg3[%c0_22, %c0_23, %c3, %c0_24, %c0_25] : memref<1x2x4x8x8xf32, #tpu.memory_space<vmem>>, vector<1x2x1x8x8xf32>
    %40 = vector.shape_cast %39 : vector<1x2x1x8x8xf32> to vector<2x8x8xf32>
    %41 = vector.shape_cast %38 : vector<2x8x8xf32> to vector<1x2x1x8x8xf32>
    tpu.vector_store %arg3[%c0_22, %c0_23, %c3, %c0_24, %c0_25], %41 {strides = array<i32>} : memref<1x2x4x8x8xf32, #tpu.memory_space<vmem>>, vector<1x2x1x8x8xf32>,
    return
  }
  func.func @transform_0(%arg0: i32, %arg1: i32) -> (i32, i32, i32, i32) {
    %c0_i32 = arith.constant 0 : i32
    %c0_i32_0 = arith.constant 0 : i32
    %c0_i32_1 = arith.constant 0 : i32
    return %arg0, %arg1, %c0_i32, %c0_i32_0 : i32, i32, i32, i32
  }
  func.func @transform_1(%arg0: i32, %arg1: i32) -> (i32, i32, i32, i32, i32) {
    %c0_i32 = arith.constant 0 : i32
    %c0_i32_0 = arith.constant 0 : i32
    %c0_i32_1 = arith.constant 0 : i32
    %c0_i32_2 = arith.constant 0 : i32
    return %arg0, %arg1, %c0_i32, %c0_i32_0, %c0_i32_1 : i32, i32, i32, i32, i32
  }
}

</mosaic_0001>

<llo_original>
// kernel: tpu_custom_call.1
$region0: #{tpu_custom_call.1}
  #allocation0 [shape = 'u32[]', space=smem, size = 0x4, offset = 0x4, fixed_abs, tag = 'smem constant byte address 0x4 - core index']
  #allocation1 [shape = 'u32[144,128]{1,0:T(1,128)}', space=vmem, size = 0x12000, scoped, tag = 'internal scratch']
  %s0 = inlined_call_operand.hbm [shape: f32[2,4,16,16], index: 0, kind: input, shape index: {}]
  %s1 = inlined_call_operand.hbm [shape: f32[2,4,4,8,8], index: 1, kind: output, shape index: {}]
  %s2 = sld [smem:[#allocation0]]
  $region41: #{tpu_custom_call.1} parent=0
    _
  %s4 = ssub.s32 1, %s2
  %s5 = scalar_select 0, %s4, %s2
  $region1: #{tpu_custom_call.1} parent=0
    #allocation2 [shape = 'u8[32768]{0}', space=vmem, size = 0x8000, scoped, tag = 'input window, operand 0']
    #allocation3 [shape = 's32[2]{0}', space=sflag, size = 0x8, scoped, tag = 'scoped memory for tpu_custom_call.1']
    #allocation4 [shape = 's32[2]{0}', space=sflag, size = 0x8, scoped, tag = 'scoped memory for tpu_custom_call.1']
    #allocation5 [shape = 'u8[65536]{0}', space=vmem, size = 0x10000, scoped, tag = 'output window, operand 0']
    %6 = vsyncpa [#allocation3], 0
    %s7 = scalar_lea.sflag [#allocation3], 1
    %8 = vsyncpa %s7, 0
    %9 = vsyncpa [#allocation4], 0
    %s10 = scalar_lea.sflag [#allocation4], 1
    %11 = vsyncpa %s10, 0
    loop: start=0, step=1, limit=6
    $region2: #{tpu_custom_call.1} parent=1 // loop_pre_header
      _
    $region3: #{tpu_custom_call.1} parent=1 // loop_header
      %s13 = sphi 0, %s17
      %p14 = scmp.ge.s32.totalorder %s13, 6
      %s20 = sphi 0, %s32
      %s21 = sphi 0, %s28
      %s22 = sphi 0, %s20
      %s23 = sphi 0, %s21
      %s24 = sphi 0, %s22
      %s25 = sphi 0, %s23
      %s37 = sphi 0, %s39
      %s40 = sphi 0, %s37
      %s41 = sphi 0, %s40
      %s57 = sphi 0, %s41
      %s65 = sphi 0, %s67
      %s68 = sphi 0, %s65
      %s69 = sphi 0, %s68
      %s85 = sphi 0, %s69
    $region4: #{tpu_custom_call.1} parent=1 // loop_header_branch
      %16 = sbr.rel (%p14) target = $region8
    $region5: #{tpu_custom_call.1} parent=1 // loop_body
      %s18 = ssub.s32 %s13, 1
      %s19 = ssub.s32 %s13, 2
      %s26 = sadd.s32 1, %s21
      %p27 = scmp.ge.s32.totalorder %s26, 2
      %s28 = scalar_select %p27, 0, %s26
      %s29 = sadd.s32 1, %s20
      %s30 = scalar_select %p27, %s29, %s20
      %p31 = scmp.ge.s32.totalorder %s30, 2
      %s32 = scalar_select %p31, 0, %s30
      %s33 = ssub.s32 %s20, %s32
      %s34 = ssub.s32 %s21, %s28
      %s35 = sor.u32 %s33, %s34
      %p36 = scmp.eq.s32.totalorder %s35, 0
      %s38 = sadd.s32 %s37, 1
      %s39 = scalar_select %p36, %s37, %s38
      %p42 = pneg %p36
      %p43 = scmp.eq.s32.totalorder %s13, 3
      %p44 = por %p42, %p43
      %p45 = scmp.ne.s32.totalorder %s37, %s40
      %p46 = scmp.eq.s32.totalorder %s13, 0
      %p47 = por %p45, %p46
      %p48 = scmp.ne.s32.totalorder %s37, %s40
      %p49 = scmp.eq.s32.totalorder %s18, 3
      %p50 = por %p48, %p49
      %p51 = scmp.ne.s32.totalorder %s40, %s41
      %p52 = scmp.eq.s32.totalorder %s18, 0
      %p53 = por %p51, %p52
      %p54 = scmp.ne.s32.totalorder %s40, %s41
      %p55 = scmp.eq.s32.totalorder %s19, 3
      %p56 = por %p54, %p55
      %p58 = scmp.ne.s32.totalorder %s41, %s57
      %p59 = scmp.eq.s32.totalorder %s19, 0
      %p60 = por %p58, %p59
      %s61 = ssub.s32 %s20, %s32
      %s62 = ssub.s32 %s21, %s28
      %s63 = sor.u32 %s61, %s62
      %p64 = scmp.eq.s32.totalorder %s63, 0
      %s66 = sadd.s32 %s65, 1
      %s67 = scalar_select %p64, %s65, %s66
      %p70 = pneg %p64
      %p71 = scmp.eq.s32.totalorder %s13, 3
      %p72 = por %p70, %p71
      %p73 = scmp.ne.s32.totalorder %s65, %s68
      %p74 = scmp.eq.s32.totalorder %s13, 0
      %p75 = por %p73, %p74
      %p76 = scmp.ne.s32.totalorder %s65, %s68
      %p77 = scmp.eq.s32.totalorder %s18, 3
      %p78 = por %p76, %p77
      %p79 = scmp.ne.s32.totalorder %s68, %s69
      %p80 = scmp.eq.s32.totalorder %s18, 0
      %p81 = por %p79, %p80
      %p82 = scmp.ne.s32.totalorder %s68, %s69
      %p83 = scmp.eq.s32.totalorder %s19, 3
      %p84 = por %p82, %p83
      %p86 = scmp.ne.s32.totalorder %s69, %s85
      %p87 = scmp.eq.s32.totalorder %s19, 0
      %p88 = por %p86, %p87
      %p89 = scmp.le.s32.totalorder 1, %s13
      %p90 = scmp.lt.s32.totalorder %s13, 5
      %p91 = pnand %p89, %p90
      %p92 = pneg %p91
      // Predicated region
      $region9: #{tpu_custom_call.1} parent=5 // pred_check
        _
      $region10: #{tpu_custom_call.1} parent=5 // pred_check_branch
        %94 = sbr.rel (%p91) target = $region12
      $region11: #{tpu_custom_call.1} parent=5 // pred_region
        %s95 = ssub.s32 %s13, 1
      $region12: #{tpu_custom_call.1} parent=5 // pred_fallthru
        _
      %p96 = scmp.lt.s32.totalorder %s13, 4
      // Predicated region
      $region13: #{tpu_custom_call.1} parent=5 // pred_check
        %p97 = pneg %p96
      $region14: #{tpu_custom_call.1} parent=5 // pred_check_branch
        %99 = sbr.rel (%p97) target = $region16
      $region15: #{tpu_custom_call.1} parent=5 // pred_region
        // Predicated region
        $region17: #{tpu_custom_call.1} parent=15 // pred_check
          %p100 = pneg %p47
        $region18: #{tpu_custom_call.1} parent=15 // pred_check_branch
          %102 = sbr.rel (%p100) target = $region20
        $region19: #{tpu_custom_call.1} parent=15 // pred_region
          %s103 = sand.u32 %s37, 1
          %s104 = scalar_lea.sflag [#allocation3], %s103
          %s105 = sand.u32 %s37, 1
          %s106 = smul.addr %s105, 32
          %s107 = scalar_lea.vmem [#allocation2], %s106
          %s108 = smul.u32 2, %s21
          %s110 = ssub.s32 512, 512
          %111 = vsyncadd %s104, %s110
          %s112 = smul.addr %s108, 2
          %s113 = smul.addr %s20, 8
          %s114 = sadd.s32 %s112, %s113
          %s115 = smul.addr %s114, 128
          %s116 = scalar_lea.hbm %s0, %s115
          %s117 = sshll.u32 %s107, 4
          %s118 = int_to_ptr.vmem [resolvable:$true] %s117
          %123 = dma.hbm_to_vmem [thread:$0]  %s116, 512, %s118, %s104, 128, 128, 8
        $region20: #{tpu_custom_call.1} parent=15 // pred_fallthru
          _
      $region16: #{tpu_custom_call.1} parent=5 // pred_fallthru
        _
      %p124 = scmp.le.s32.totalorder 1, %s13
      %p125 = scmp.lt.s32.totalorder %s13, 5
      %p126 = pnand %p124, %p125
      %p127 = pneg %p126
      // Predicated region
      $region21: #{tpu_custom_call.1} parent=5 // pred_check
        _
      $region22: #{tpu_custom_call.1} parent=5 // pred_check_branch
        %129 = sbr.rel (%p126) target = $region24
      $region23: #{tpu_custom_call.1} parent=5 // pred_region
        %s130 = ssub.s32 %s13, 1
        %s131 = sand.u32 %s40, 1
        %s132 = scalar_lea.sflag [#allocation3], %s131
        %s133 = sand.u32 %s40, 1
        %s134 = smul.addr %s133, 32
        %s135 = scalar_lea.vmem [#allocation2], %s134
        // Predicated region
        $region25: #{tpu_custom_call.1} parent=23 // pred_check
          %p136 = pneg %p53
        $region26: #{tpu_custom_call.1} parent=23 // pred_check_branch
          %138 = sbr.rel (%p136) target = $region28
        $region27: #{tpu_custom_call.1} parent=23 // pred_region
          %139 = dma.done %s132, 512
        $region28: #{tpu_custom_call.1} parent=23 // pred_fallthru
          _
        %s140 = sand.u32 %s40, 1
        %s141 = scalar_lea.sflag [#allocation3], %s140
        %s142 = sand.u32 %s40, 1
        %s143 = smul.addr %s142, 32
        %s144 = scalar_lea.vmem [#allocation2], %s143
        %p145 = pneg %p53
        %p146 = pneg %p50
        %p147 = pneg %p81
        %p148 = pneg %p78
        %s149 = sand.u32 %s68, 1
        %s150 = scalar_lea.sflag [#allocation4], %s149
        %s151 = sand.u32 %s68, 1
        %s152 = smul.addr %s151, 64
        %s153 = scalar_lea.vmem [#allocation5], %s152
        %s154 = smul.u32 2, %s23
        %s155 = smul.u32 2, %s23
        %v156 = vlaneseq
        %v157 = vshrl.u32 %v156, 7
        %v158 = vadd.s32 %v157, 8
        %v159 = vlaneseq
        %v160 = vand.u32 %v159, 127
        %vm161 = vcmp.ge.s32.totalorder %v160, 8
        %v162 = vsel %vm161, 1, 0
        %v163 = vmul.u32 %v162, 8
        %v164 = vsub.s32 %v160, %v163
        %v165 = vmul.u32 %v164, 2
        %v166 = vadd.s32 %v165, %v162
        %vm167 = vcmp.eq.s32.totalorder %v157, %v166
        %vm168 = vcmp.eq.s32.totalorder %v158, %v166
        %v169 = vsel %vm167, 1, 0
        %v170 = vsel %vm168, 1, 0
        %v171 = vcvt.s32.f32 %v169
        %v172 = vcvt.s32.f32 %v170
        %v173 = vld [vmem:[%s135] ss:$2 sm:$0xff]
        %s174 = scalar_lea.vmem %s135, 16 [#allocation2]
        %v175 = vld [vmem:[%s174] ss:$2 sm:$0xff]
        %vm176 = vcmask 130048
        %v178 = vsel %vm176, %v173, 0
        %v181 = vsel %vm176, %v175, 0
        %183 = vmatprep.subr.mxu0 0.0
        %v184 = vand.u32 %v171, 4294901760
        %185 = vmatpush1.msra.mxu0 %v184
        %186 = vmatprep.subr.mxu0 0.0
        %v187 = vand.u32 %v172, 4294901760
        %188 = vmatpush1.msra.mxu0 %v187
        %189 = vmatprep.subr.mxu0 0.0
        %190 = vmatpush1.msra.mxu0 0.0
        %191 = vmatprep.subr.mxu0 0.0
        %192 = vmatpush1.msra.mxu0 0.0
        %193 = vmatprep.subr.mxu0 0.0
        %194 = vmatpush1.msra.mxu0 0.0
        %195 = vmatprep.subr.mxu0 0.0
        %196 = vmatpush1.msra.mxu0 0.0
        %197 = vmatprep.subr.mxu0 0.0
        %198 = vmatpush1.msra.mxu0 0.0
        %199 = vmatprep.subr.mxu0 0.0
        %200 = vmatpush1.msra.mxu0 0.0
        %201 = vmatprep.subr.mxu0 0.0
        %202 = vmatpush1.msra.mxu0 0.0
        %203 = vmatprep.subr.mxu0 0.0
        %204 = vmatpush1.msra.mxu0 0.0
        %205 = vmatprep.subr.mxu0 0.0
        %206 = vmatpush1.msra.mxu0 0.0
        %207 = vmatprep.subr.mxu0 0.0
        %208 = vmatpush1.msra.mxu0 0.0
        %209 = vmatprep.subr.mxu0 0.0
        %210 = vmatpush1.msra.mxu0 0.0
        %211 = vmatprep.subr.mxu0 0.0
        %212 = vmatpush1.msra.mxu0 0.0
        %213 = vmatprep.subr.mxu0 0.0
        %214 = vmatpush1.msra.mxu0 0.0
        %215 = vmatprep.subr.mxu0 0.0
        %216 = vmatpush1.msra.mxu0 0.0
        %217 = vmatprep.subr.mxu0 0.0
        %218 = vmatpush1.msra.mxu0 0.0
        %219 = vmatprep.subr.mxu0 0.0
        %220 = vmatpush1.msra.mxu0 0.0
        %221 = vmatprep.subr.mxu0 0.0
        %222 = vmatpush1.msra.mxu0 0.0
        %223 = vmatprep.subr.mxu0 0.0
        %224 = vmatpush1.msra.mxu0 0.0
        %225 = vmatprep.subr.mxu0 0.0
        %226 = vmatpush1.msra.mxu0 0.0
        %227 = vmatprep.subr.mxu0 0.0
        %228 = vmatpush1.msra.mxu0 0.0
        %229 = vmatprep.subr.mxu0 0.0
        %230 = vmatpush1.msra.mxu0 0.0
        %231 = vmatprep.subr.mxu0 0.0
        %232 = vmatpush1.msra.mxu0 0.0
        %233 = vmatprep.subr.mxu0 0.0
        %234 = vmatpush1.msra.mxu0 0.0
        %235 = vmatprep.subr.mxu0 0.0
        %236 = vmatpush1.msra.mxu0 0.0
        %237 = vmatprep.subr.mxu0 0.0
        %238 = vmatpush1.msra.mxu0 0.0
        %239 = vmatprep.subr.mxu0 0.0
        %240 = vmatpush1.msra.mxu0 0.0
        %241 = vmatprep.subr.mxu0 0.0
        %242 = vmatpush1.msra.mxu0 0.0
        %243 = vmatprep.subr.mxu0 0.0
        %244 = vmatpush1.msra.mxu0 0.0
        %245 = vmatprep.subr.mxu0 0.0
        %246 = vmatpush1.msra.mxu0 0.0
        %247 = vmatprep.subr.mxu0 0.0
        %248 = vmatpush1.msra.mxu0 0.0
        %249 = vmatprep.mubr.f32.mxu0 0.0
        %v250 = vand.u32 %v178, 4294901760
        %v251 = vsub.f32 %v178, %v250
        %v252 = vand.u32 %v251, 4294901760
        %v253 = vsub.f32 %v251, %v252
        %v254 = vand.u32 %v253, 4294901760
        %255 = vmatmul.mubr.f32.gmra.mrb[0].mxu0 %v254
        %v256 = vpop.f32.mrb[0].mxu0
        %v257 = vadd.f32 0.0, %v256
        %v258 = vpop.f32.mrb[0].mxu0
        %259 = vmatprep.mubr.f32.mxu0 0.0
        %v260 = vand.u32 %v181, 4294901760
        %v261 = vsub.f32 %v181, %v260
        %v262 = vand.u32 %v261, 4294901760
        %v263 = vsub.f32 %v261, %v262
        %v264 = vand.u32 %v263, 4294901760
        %265 = vmatmul.mubr.f32.gmra.mrb[0].mxu0 %v264
        %v266 = vpop.f32.mrb[0].mxu0
        %v267 = vadd.f32 0.0, %v266
        %v268 = vpop.f32.mrb[0].mxu0
        %269 = vdwg.mxu0
        %270 = vmatprep.subr.mxu0 0.0
        %v271 = vand.u32 %v171, 4294901760
        %v272 = vsub.f32 %v171, %v271
        %v273 = vand.u32 %v272, 4294901760
        %v274 = vsub.f32 %v272, %v273
        %v275 = vand.u32 %v274, 4294901760
        %276 = vmatpush1.msra.mxu0 %v275
        %277 = vmatprep.subr.mxu0 0.0
        %v278 = vand.u32 %v172, 4294901760
        %v279 = vsub.f32 %v172, %v278
        %v280 = vand.u32 %v279, 4294901760
        %v281 = vsub.f32 %v279, %v280
        %v282 = vand.u32 %v281, 4294901760
        %283 = vmatpush1.msra.mxu0 %v282
        %284 = vmatprep.subr.mxu0 0.0
        %285 = vmatpush1.msra.mxu0 0.0
        %286 = vmatprep.subr.mxu0 0.0
        %287 = vmatpush1.msra.mxu0 0.0
        %288 = vmatprep.subr.mxu0 0.0
        %289 = vmatpush1.msra.mxu0 0.0
        %290 = vmatprep.subr.mxu0 0.0
        %291 = vmatpush1.msra.mxu0 0.0
        %292 = vmatprep.subr.mxu0 0.0
        %293 = vmatpush1.msra.mxu0 0.0
        %294 = vmatprep.subr.mxu0 0.0
        %295 = vmatpush1.msra.mxu0 0.0
        %296 = vmatprep.subr.mxu0 0.0
        %297 = vmatpush1.msra.mxu0 0.0
        %298 = vmatprep.subr.mxu0 0.0
        %299 = vmatpush1.msra.mxu0 0.0
        %300 = vmatprep.subr.mxu0 0.0
        %301 = vmatpush1.msra.mxu0 0.0
        %302 = vmatprep.subr.mxu0 0.0
        %303 = vmatpush1.msra.mxu0 0.0
        %304 = vmatprep.subr.mxu0 0.0
        %305 = vmatpush1.msra.mxu0 0.0
        %306 = vmatprep.subr.mxu0 0.0
        %307 = vmatpush1.msra.mxu0 0.0
        %308 = vmatprep.subr.mxu0 0.0
        %309 = vmatpush1.msra.mxu0 0.0
        %310 = vmatprep.subr.mxu0 0.0
        %311 = vmatpush1.msra.mxu0 0.0
        %312 = vmatprep.subr.mxu0 0.0
        %313 = vmatpush1.msra.mxu0 0.0
        %314 = vmatprep.subr.mxu0 0.0
        %315 = vmatpush1.msra.mxu0 0.0
        %316 = vmatprep.subr.mxu0 0.0
        %317 = vmatpush1.msra.mxu0 0.0
        %318 = vmatprep.subr.mxu0 0.0
        %319 = vmatpush1.msra.mxu0 0.0
        %320 = vmatprep.subr.mxu0 0.0
        %321 = vmatpush1.msra.mxu0 0.0
        %322 = vmatprep.subr.mxu0 0.0
        %323 = vmatpush1.msra.mxu0 0.0
        %324 = vmatprep.subr.mxu0 0.0
        %325 = vmatpush1.msra.mxu0 0.0
        %326 = vmatprep.subr.mxu0 0.0
        %327 = vmatpush1.msra.mxu0 0.0
        %328 = vmatprep.subr.mxu0 0.0
        %329 = vmatpush1.msra.mxu0 0.0
        %330 = vmatprep.subr.mxu0 0.0
        %331 = vmatpush1.msra.mxu0 0.0
        %332 = vmatprep.subr.mxu0 0.0
        %333 = vmatpush1.msra.mxu0 0.0
        %334 = vmatprep.subr.mxu0 0.0
        %335 = vmatpush1.msra.mxu0 0.0
        %336 = vmatprep.subr.mxu0 0.0
        %337 = vmatpush1.msra.mxu0 0.0
        %338 = vmatprep.subr.mxu0 0.0
        %339 = vmatpush1.msra.mxu0 0.0
        %340 = vmatprep.subr.mxu0 0.0
        %341 = vmatpush1.msra.mxu0 0.0
        %342 = vmatprep.subr.mxu0 0.0
        %343 = vmatpush1.msra.mxu0 0.0
        %344 = vmatprep.mubr.f32.mxu0 0.0
        %v345 = vand.u32 %v178, 4294901760
        %346 = vmatmul.mubr.f32.gmra.mrb[0].mxu0 %v345
        %v347 = vpop.f32.mrb[0].mxu0
        %v348 = vadd.f32 %v257, %v347
        %v349 = vpop.f32.mrb[0].mxu0
        %350 = vmatprep.mubr.f32.mxu0 0.0
        %v351 = vand.u32 %v181, 4294901760
        %352 = vmatmul.mubr.f32.gmra.mrb[0].mxu0 %v351
        %v353 = vpop.f32.mrb[0].mxu0
        %v354 = vadd.f32 %v267, %v353
        %v355 = vpop.f32.mrb[0].mxu0
        %356 = vdwg.mxu0
        %357 = vmatprep.subr.mxu0 0.0
        %v358 = vand.u32 %v171, 4294901760
        %v359 = vsub.f32 %v171, %v358
        %360 = vmatpush1.msra.mxu0 %v359
        %361 = vmatprep.subr.mxu0 0.0
        %v362 = vand.u32 %v172, 4294901760
        %v363 = vsub.f32 %v172, %v362
        %364 = vmatpush1.msra.mxu0 %v363
        %365 = vmatprep.subr.mxu0 0.0
        %366 = vmatpush1.msra.mxu0 0.0
        %367 = vmatprep.subr.mxu0 0.0
        %368 = vmatpush1.msra.mxu0 0.0
        %369 = vmatprep.subr.mxu0 0.0
        %370 = vmatpush1.msra.mxu0 0.0
        %371 = vmatprep.subr.mxu0 0.0
        %372 = vmatpush1.msra.mxu0 0.0
        %373 = vmatprep.subr.mxu0 0.0
        %374 = vmatpush1.msra.mxu0 0.0
        %375 = vmatprep.subr.mxu0 0.0
        %376 = vmatpush1.msra.mxu0 0.0
        %377 = vmatprep.subr.mxu0 0.0
        %378 = vmatpush1.msra.mxu0 0.0
        %379 = vmatprep.subr.mxu0 0.0
        %380 = vmatpush1.msra.mxu0 0.0
        %381 = vmatprep.subr.mxu0 0.0
        %382 = vmatpush1.msra.mxu0 0.0
        %383 = vmatprep.subr.mxu0 0.0
        %384 = vmatpush1.msra.mxu0 0.0
        %385 = vmatprep.subr.mxu0 0.0
        %386 = vmatpush1.msra.mxu0 0.0
        %387 = vmatprep.subr.mxu0 0.0
        %388 = vmatpush1.msra.mxu0 0.0
        %389 = vmatprep.subr.mxu0 0.0
        %390 = vmatpush1.msra.mxu0 0.0
        %391 = vmatprep.subr.mxu0 0.0
        %392 = vmatpush1.msra.mxu0 0.0
        %393 = vmatprep.subr.mxu0 0.0
        %394 = vmatpush1.msra.mxu0 0.0
        %395 = vmatprep.subr.mxu0 0.0
        %396 = vmatpush1.msra.mxu0 0.0
        %397 = vmatprep.subr.mxu0 0.0
        %398 = vmatpush1.msra.mxu0 0.0
        %399 = vmatprep.subr.mxu0 0.0
        %400 = vmatpush1.msra.mxu0 0.0
        %401 = vmatprep.subr.mxu0 0.0
        %402 = vmatpush1.msra.mxu0 0.0
        %403 = vmatprep.subr.mxu0 0.0
        %404 = vmatpush1.msra.mxu0 0.0
        %405 = vmatprep.subr.mxu0 0.0
        %406 = vmatpush1.msra.mxu0 0.0
        %407 = vmatprep.subr.mxu0 0.0
        %408 = vmatpush1.msra.mxu0 0.0
        %409 = vmatprep.subr.mxu0 0.0
        %410 = vmatpush1.msra.mxu0 0.0
        %411 = vmatprep.subr.mxu0 0.0
        %412 = vmatpush1.msra.mxu0 0.0
        %413 = vmatprep.subr.mxu0 0.0
        %414 = vmatpush1.msra.mxu0 0.0
        %415 = vmatprep.subr.mxu0 0.0
        %416 = vmatpush1.msra.mxu0 0.0
        %417 = vmatprep.subr.mxu0 0.0
        %418 = vmatpush1.msra.mxu0 0.0
        %419 = vmatprep.subr.mxu0 0.0
        %420 = vmatpush1.msra.mxu0 0.0
        %421 = vmatprep.subr.mxu0 0.0
        %422 = vmatpush1.msra.mxu0 0.0
        %423 = vmatprep.subr.mxu0 0.0
        %424 = vmatpush1.msra.mxu0 0.0
        %425 = vmatprep.mubr.f32.mxu0 0.0
        %v426 = vand.u32 %v178, 4294901760
        %v427 = vsub.f32 %v178, %v426
        %428 = vmatmul.mubr.f32.gmra.mrb[0].mxu0 %v427
        %v429 = vpop.f32.mrb[0].mxu0
        %v430 = vadd.f32 %v348, %v429
        %v431 = vpop.f32.mrb[0].mxu0
        %432 = vmatprep.mubr.f32.mxu0 0.0
        %v433 = vand.u32 %v181, 4294901760
        %v434 = vsub.f32 %v181, %v433
        %435 = vmatmul.mubr.f32.gmra.mrb[0].mxu0 %v434
        %v436 = vpop.f32.mrb[0].mxu0
        %v437 = vadd.f32 %v354, %v436
        %v438 = vpop.f32.mrb[0].mxu0
        %439 = vdwg.mxu0
        %440 = vmatprep.subr.mxu0 0.0
        %v441 = vand.u32 %v171, 4294901760
        %442 = vmatpush1.msra.mxu0 %v441
        %443 = vmatprep.subr.mxu0 0.0
        %v444 = vand.u32 %v172, 4294901760
        %445 = vmatpush1.msra.mxu0 %v444
        %446 = vmatprep.subr.mxu0 0.0
        %447 = vmatpush1.msra.mxu0 0.0
        %448 = vmatprep.subr.mxu0 0.0
        %449 = vmatpush1.msra.mxu0 0.0
        %450 = vmatprep.subr.mxu0 0.0
        %451 = vmatpush1.msra.mxu0 0.0
        %452 = vmatprep.subr.mxu0 0.0
        %453 = vmatpush1.msra.mxu0 0.0
        %454 = vmatprep.subr.mxu0 0.0
        %455 = vmatpush1.msra.mxu0 0.0
        %456 = vmatprep.subr.mxu0 0.0
        %457 = vmatpush1.msra.mxu0 0.0
        %458 = vmatprep.subr.mxu0 0.0
        %459 = vmatpush1.msra.mxu0 0.0
        %460 = vmatprep.subr.mxu0 0.0
        %461 = vmatpush1.msra.mxu0 0.0
        %462 = vmatprep.subr.mxu0 0.0
        %463 = vmatpush1.msra.mxu0 0.0
        %464 = vmatprep.subr.mxu0 0.0
        %465 = vmatpush1.msra.mxu0 0.0
        %466 = vmatprep.subr.mxu0 0.0
        %467 = vmatpush1.msra.mxu0 0.0
        %468 = vmatprep.subr.mxu0 0.0
        %469 = vmatpush1.msra.mxu0 0.0
        %470 = vmatprep.subr.mxu0 0.0
        %471 = vmatpush1.msra.mxu0 0.0
        %472 = vmatprep.subr.mxu0 0.0
        %473 = vmatpush1.msra.mxu0 0.0
        %474 = vmatprep.subr.mxu0 0.0
        %475 = vmatpush1.msra.mxu0 0.0
        %476 = vmatprep.subr.mxu0 0.0
        %477 = vmatpush1.msra.mxu0 0.0
        %478 = vmatprep.subr.mxu0 0.0
        %479 = vmatpush1.msra.mxu0 0.0
        %480 = vmatprep.subr.mxu0 0.0
        %481 = vmatpush1.msra.mxu0 0.0
        %482 = vmatprep.subr.mxu0 0.0
        %483 = vmatpush1.msra.mxu0 0.0
        %484 = vmatprep.subr.mxu0 0.0
        %485 = vmatpush1.msra.mxu0 0.0
        %486 = vmatprep.subr.mxu0 0.0
        %487 = vmatpush1.msra.mxu0 0.0
        %488 = vmatprep.subr.mxu0 0.0
        %489 = vmatpush1.msra.mxu0 0.0
        %490 = vmatprep.subr.mxu0 0.0
        %491 = vmatpush1.msra.mxu0 0.0
        %492 = vmatprep.subr.mxu0 0.0
        %493 = vmatpush1.msra.mxu0 0.0
        %494 = vmatprep.subr.mxu0 0.0
        %495 = vmatpush1.msra.mxu0 0.0
        %496 = vmatprep.subr.mxu0 0.0
        %497 = vmatpush1.msra.mxu0 0.0
        %498 = vmatprep.subr.mxu0 0.0
        %499 = vmatpush1.msra.mxu0 0.0
        %500 = vmatprep.subr.mxu0 0.0
        %501 = vmatpush1.msra.mxu0 0.0
        %502 = vmatprep.subr.mxu0 0.0
        %503 = vmatpush1.msra.mxu0 0.0
        %504 = vmatprep.subr.mxu0 0.0
        %505 = vmatpush1.msra.mxu0 0.0
        %506 = vmatprep.mubr.f32.mxu0 0.0
        %v507 = vand.u32 %v178, 4294901760
        %v508 = vsub.f32 %v178, %v507
        %v509 = vand.u32 %v508, 4294901760
        %510 = vmatmul.mubr.f32.gmra.mrb[0].mxu0 %v509
        %v511 = vpop.f32.mrb[0].mxu0
        %v512 = vadd.f32 %v430, %v511
        %v513 = vpop.f32.mrb[0].mxu0
        %514 = vmatprep.mubr.f32.mxu0 0.0
        %v515 = vand.u32 %v181, 4294901760
        %v516 = vsub.f32 %v181, %v515
        %v517 = vand.u32 %v516, 4294901760
        %518 = vmatmul.mubr.f32.gmra.mrb[0].mxu0 %v517
        %v519 = vpop.f32.mrb[0].mxu0
        %v520 = vadd.f32 %v437, %v519
        %v521 = vpop.f32.mrb[0].mxu0
        %522 = vdwg.mxu0
        %523 = vmatprep.subr.mxu0 0.0
        %v524 = vand.u32 %v171, 4294901760
        %v525 = vsub.f32 %v171, %v524
        %v526 = vand.u32 %v525, 4294901760
        %527 = vmatpush1.msra.mxu0 %v526
        %528 = vmatprep.subr.mxu0 0.0
        %v529 = vand.u32 %v172, 4294901760
        %v530 = vsub.f32 %v172, %v529
        %v531 = vand.u32 %v530, 4294901760
        %532 = vmatpush1.msra.mxu0 %v531
        %533 = vmatprep.subr.mxu0 0.0
        %534 = vmatpush1.msra.mxu0 0.0
        %535 = vmatprep.subr.mxu0 0.0
        %536 = vmatpush1.msra.mxu0 0.0
        %537 = vmatprep.subr.mxu0 0.0
        %538 = vmatpush1.msra.mxu0 0.0
        %539 = vmatprep.subr.mxu0 0.0
        %540 = vmatpush1.msra.mxu0 0.0
        %541 = vmatprep.subr.mxu0 0.0
        %542 = vmatpush1.msra.mxu0 0.0
        %543 = vmatprep.subr.mxu0 0.0
        %544 = vmatpush1.msra.mxu0 0.0
        %545 = vmatprep.subr.mxu0 0.0
        %546 = vmatpush1.msra.mxu0 0.0
        %547 = vmatprep.subr.mxu0 0.0
        %548 = vmatpush1.msra.mxu0 0.0
        %549 = vmatprep.subr.mxu0 0.0
        %550 = vmatpush1.msra.mxu0 0.0
        %551 = vmatprep.subr.mxu0 0.0
        %552 = vmatpush1.msra.mxu0 0.0
        %553 = vmatprep.subr.mxu0 0.0
        %554 = vmatpush1.msra.mxu0 0.0
        %555 = vmatprep.subr.mxu0 0.0
        %556 = vmatpush1.msra.mxu0 0.0
        %557 = vmatprep.subr.mxu0 0.0
        %558 = vmatpush1.msra.mxu0 0.0
        %559 = vmatprep.subr.mxu0 0.0
        %560 = vmatpush1.msra.mxu0 0.0
        %561 = vmatprep.subr.mxu0 0.0
        %562 = vmatpush1.msra.mxu0 0.0
        %563 = vmatprep.subr.mxu0 0.0
        %564 = vmatpush1.msra.mxu0 0.0
        %565 = vmatprep.subr.mxu0 0.0
        %566 = vmatpush1.msra.mxu0 0.0
        %567 = vmatprep.subr.mxu0 0.0
        %568 = vmatpush1.msra.mxu0 0.0
        %569 = vmatprep.subr.mxu0 0.0
        %570 = vmatpush1.msra.mxu0 0.0
        %571 = vmatprep.subr.mxu0 0.0
        %572 = vmatpush1.msra.mxu0 0.0
        %573 = vmatprep.subr.mxu0 0.0
        %574 = vmatpush1.msra.mxu0 0.0
        %575 = vmatprep.subr.mxu0 0.0
        %576 = vmatpush1.msra.mxu0 0.0
        %577 = vmatprep.subr.mxu0 0.0
        %578 = vmatpush1.msra.mxu0 0.0
        %579 = vmatprep.subr.mxu0 0.0
        %580 = vmatpush1.msra.mxu0 0.0
        %581 = vmatprep.subr.mxu0 0.0
        %582 = vmatpush1.msra.mxu0 0.0
        %583 = vmatprep.subr.mxu0 0.0
        %584 = vmatpush1.msra.mxu0 0.0
        %585 = vmatprep.subr.mxu0 0.0
        %586 = vmatpush1.msra.mxu0 0.0
        %587 = vmatprep.subr.mxu0 0.0
        %588 = vmatpush1.msra.mxu0 0.0
        %589 = vmatprep.subr.mxu0 0.0
        %590 = vmatpush1.msra.mxu0 0.0
        %591 = vmatprep.subr.mxu0 0.0
        %592 = vmatpush1.msra.mxu0 0.0
        %593 = vmatprep.mubr.f32.mxu0 0.0
        %v594 = vand.u32 %v178, 4294901760
        %595 = vmatmul.mubr.f32.gmra.mrb[0].mxu0 %v594
        %v596 = vpop.f32.mrb[0].mxu0
        %v597 = vadd.f32 %v512, %v596
        %v598 = vpop.f32.mrb[0].mxu0
        %599 = vmatprep.mubr.f32.mxu0 0.0
        %v600 = vand.u32 %v181, 4294901760
        %601 = vmatmul.mubr.f32.gmra.mrb[0].mxu0 %v600
        %v602 = vpop.f32.mrb[0].mxu0
        %v603 = vadd.f32 %v520, %v602
        %v604 = vpop.f32.mrb[0].mxu0
        %605 = vdwg.mxu0
        %606 = vmatprep.subr.mxu0 0.0
        %v607 = vand.u32 %v171, 4294901760
        %608 = vmatpush1.msra.mxu0 %v607
        %609 = vmatprep.subr.mxu0 0.0
        %v610 = vand.u32 %v172, 4294901760
        %611 = vmatpush1.msra.mxu0 %v610
        %612 = vmatprep.subr.mxu0 0.0
        %613 = vmatpush1.msra.mxu0 0.0
        %614 = vmatprep.subr.mxu0 0.0
        %615 = vmatpush1.msra.mxu0 0.0
        %616 = vmatprep.subr.mxu0 0.0
        %617 = vmatpush1.msra.mxu0 0.0
        %618 = vmatprep.subr.mxu0 0.0
        %619 = vmatpush1.msra.mxu0 0.0
        %620 = vmatprep.subr.mxu0 0.0
        %621 = vmatpush1.msra.mxu0 0.0
        %622 = vmatprep.subr.mxu0 0.0
        %623 = vmatpush1.msra.mxu0 0.0
        %624 = vmatprep.subr.mxu0 0.0
        %625 = vmatpush1.msra.mxu0 0.0
        %626 = vmatprep.subr.mxu0 0.0
        %627 = vmatpush1.msra.mxu0 0.0
        %628 = vmatprep.subr.mxu0 0.0
        %629 = vmatpush1.msra.mxu0 0.0
        %630 = vmatprep.subr.mxu0 0.0
        %631 = vmatpush1.msra.mxu0 0.0
        %632 = vmatprep.subr.mxu0 0.0
        %633 = vmatpush1.msra.mxu0 0.0
        %634 = vmatprep.subr.mxu0 0.0
        %635 = vmatpush1.msra.mxu0 0.0
        %636 = vmatprep.subr.mxu0 0.0
        %637 = vmatpush1.msra.mxu0 0.0
        %638 = vmatprep.subr.mxu0 0.0
        %639 = vmatpush1.msra.mxu0 0.0
        %640 = vmatprep.subr.mxu0 0.0
        %641 = vmatpush1.msra.mxu0 0.0
        %642 = vmatprep.subr.mxu0 0.0
        %643 = vmatpush1.msra.mxu0 0.0
        %644 = vmatprep.subr.mxu0 0.0
        %645 = vmatpush1.msra.mxu0 0.0
        %646 = vmatprep.subr.mxu0 0.0
        %647 = vmatpush1.msra.mxu0 0.0
        %648 = vmatprep.subr.mxu0 0.0
        %649 = vmatpush1.msra.mxu0 0.0
        %650 = vmatprep.subr.mxu0 0.0
        %651 = vmatpush1.msra.mxu0 0.0
        %652 = vmatprep.subr.mxu0 0.0
        %653 = vmatpush1.msra.mxu0 0.0
        %654 = vmatprep.subr.mxu0 0.0
        %655 = vmatpush1.msra.mxu0 0.0
        %656 = vmatprep.subr.mxu0 0.0
        %657 = vmatpush1.msra.mxu0 0.0
        %658 = vmatprep.subr.mxu0 0.0
        %659 = vmatpush1.msra.mxu0 0.0
        %660 = vmatprep.subr.mxu0 0.0
        %661 = vmatpush1.msra.mxu0 0.0
        %662 = vmatprep.subr.mxu0 0.0
        %663 = vmatpush1.msra.mxu0 0.0
        %664 = vmatprep.subr.mxu0 0.0
        %665 = vmatpush1.msra.mxu0 0.0
        %666 = vmatprep.subr.mxu0 0.0
        %667 = vmatpush1.msra.mxu0 0.0
        %668 = vmatprep.subr.mxu0 0.0
        %669 = vmatpush1.msra.mxu0 0.0
        %670 = vmatprep.subr.mxu0 0.0
        %671 = vmatpush1.msra.mxu0 0.0
        %672 = vmatprep.mubr.f32.mxu0 0.0
        %v673 = vand.u32 %v178, 4294901760
        %674 = vmatmul.mubr.f32.gmra.mrb[0].mxu0 %v673
        %v675 = vpop.f32.mrb[0].mxu0
        %v676 = vadd.f32 %v597, %v675
        %v677 = vpop.f32.mrb[0].mxu0
        %678 = vmatprep.mubr.f32.mxu0 0.0
        %v679 = vand.u32 %v181, 4294901760
        %680 = vmatmul.mubr.f32.gmra.mrb[0].mxu0 %v679
        %v681 = vpop.f32.mrb[0].mxu0
        %v682 = vadd.f32 %v603, %v681
        %v683 = vpop.f32.mrb[0].mxu0
        %684 = vdwg.mxu0
        %vm685 = vcmask 64512
        %686 = vst.msk [vmem:[%s153] sm:$0xff] %vm685, %v676
        %687 = vst.msk [vmem:[%s153 + $0x20] sm:$0xff] %vm685, %v682
        %690 = vrot.lane.b32.xlu0 %v676, 120
        %v691 = vpop.permute.xlu0 %690
        %692 = vrot.lane.b32.xlu0 %v682, 120
        %v693 = vpop.permute.xlu0 %692
        %s696 = scalar_lea.vmem %s153, 8 [#allocation5]
        %697 = vst.msk [vmem:[%s696] sm:$0xff] %vm685, %v691
        %698 = vst.msk [vmem:[%s696 + $0x20] sm:$0xff] %vm685, %v693
        %s699 = scalar_lea.vmem %s135, 1 [#allocation2]
        %v700 = vld [vmem:[%s699] ss:$2 sm:$0xff]
        %s701 = scalar_lea.vmem %s135, 17 [#allocation2]
        %v702 = vld [vmem:[%s701] ss:$2 sm:$0xff]
        %v704 = vsel %vm176, %v700, 0
        %v707 = vsel %vm176, %v702, 0
        %709 = vmatprep.subr.mxu0 0.0
        %v710 = vand.u32 %v171, 4294901760
        %711 = vmatpush1.msra.mxu0 %v710
        %712 = vmatprep.subr.mxu0 0.0
        %v713 = vand.u32 %v172, 4294901760
        %714 = vmatpush1.msra.mxu0 %v713
        %715 = vmatprep.subr.mxu0 0.0
        %716 = vmatpush1.msra.mxu0 0.0
        %717 = vmatprep.subr.mxu0 0.0
        %718 = vmatpush1.msra.mxu0 0.0
        %719 = vmatprep.subr.mxu0 0.0
        %720 = vmatpush1.msra.mxu0 0.0
        %721 = vmatprep.subr.mxu0 0.0
        %722 = vmatpush1.msra.mxu0 0.0
        %723 = vmatprep.subr.mxu0 0.0
        %724 = vmatpush1.msra.mxu0 0.0
        %725 = vmatprep.subr.mxu0 0.0
        %726 = vmatpush1.msra.mxu0 0.0
        %727 = vmatprep.subr.mxu0 0.0
        %728 = vmatpush1.msra.mxu0 0.0
        %729 = vmatprep.subr.mxu0 0.0
        %730 = vmatpush1.msra.mxu0 0.0
        %731 = vmatprep.subr.mxu0 0.0
        %732 = vmatpush1.msra.mxu0 0.0
        %733 = vmatprep.subr.mxu0 0.0
        %734 = vmatpush1.msra.mxu0 0.0
        %735 = vmatprep.subr.mxu0 0.0
        %736 = vmatpush1.msra.mxu0 0.0
        %737 = vmatprep.subr.mxu0 0.0
        %738 = vmatpush1.msra.mxu0 0.0
        %739 = vmatprep.subr.mxu0 0.0
        %740 = vmatpush1.msra.mxu0 0.0
        %741 = vmatprep.subr.mxu0 0.0
        %742 = vmatpush1.msra.mxu0 0.0
        %743 = vmatprep.subr.mxu0 0.0
        %744 = vmatpush1.msra.mxu0 0.0
        %745 = vmatprep.subr.mxu0 0.0
        %746 = vmatpush1.msra.mxu0 0.0
        %747 = vmatprep.subr.mxu0 0.0
        %748 = vmatpush1.msra.mxu0 0.0
        %749 = vmatprep.subr.mxu0 0.0
        %750 = vmatpush1.msra.mxu0 0.0
        %751 = vmatprep.subr.mxu0 0.0
        %752 = vmatpush1.msra.mxu0 0.0
        %753 = vmatprep.subr.mxu0 0.0
        %754 = vmatpush1.msra.mxu0 0.0
        %755 = vmatprep.subr.mxu0 0.0
        %756 = vmatpush1.msra.mxu0 0.0
        %757 = vmatprep.subr.mxu0 0.0
        %758 = vmatpush1.msra.mxu0 0.0
        %759 = vmatprep.subr.mxu0 0.0
        %760 = vmatpush1.msra.mxu0 0.0
        %761 = vmatprep.subr.mxu0 0.0
        %762 = vmatpush1.msra.mxu0 0.0
        %763 = vmatprep.subr.mxu0 0.0
        %764 = vmatpush1.msra.mxu0 0.0
        %765 = vmatprep.subr.mxu0 0.0
        %766 = vmatpush1.msra.mxu0 0.0
        %767 = vmatprep.subr.mxu0 0.0
        %768 = vmatpush1.msra.mxu0 0.0
        %769 = vmatprep.subr.mxu0 0.0
        %770 = vmatpush1.msra.mxu0 0.0
        %771 = vmatprep.subr.mxu0 0.0
        %772 = vmatpush1.msra.mxu0 0.0
        %773 = vmatprep.subr.mxu0 0.0
        %774 = vmatpush1.msra.mxu0 0.0
        %775 = vmatprep.mubr.f32.mxu0 0.0
        %v776 = vand.u32 %v704, 4294901760
        %v777 = vsub.f32 %v704, %v776
        %v778 = vand.u32 %v777, 4294901760
        %v779 = vsub.f32 %v777, %v778
        %v780 = vand.u32 %v779, 4294901760
        %781 = vmatmul.mubr.f32.gmra.mrb[0].mxu0 %v780
        %v782 = vpop.f32.mrb[0].mxu0
        %v783 = vadd.f32 0.0, %v782
        %v784 = vpop.f32.mrb[0].mxu0
        %785 = vmatprep.mubr.f32.mxu0 0.0
        %v786 = vand.u32 %v707, 4294901760
        %v787 = vsub.f32 %v707, %v786
        %v788 = vand.u32 %v787, 4294901760
        %v789 = vsub.f32 %v787, %v788
        %v790 = vand.u32 %v789, 4294901760
        %791 = vmatmul.mubr.f32.gmra.mrb[0].mxu0 %v790
        %v792 = vpop.f32.mrb[0].mxu0
        %v793 = vadd.f32 0.0, %v792
        %v794 = vpop.f32.mrb[0].mxu0
        %795 = vdwg.mxu0
        %796 = vmatprep.subr.mxu0 0.0
        %v797 = vand.u32 %v171, 4294901760
        %v798 = vsub.f32 %v171, %v797
        %v799 = vand.u32 %v798, 4294901760
        %v800 = vsub.f32 %v798, %v799
        %v801 = vand.u32 %v800, 4294901760
        %802 = vmatpush1.msra.mxu0 %v801
        %803 = vmatprep.subr.mxu0 0.0
        %v804 = vand.u32 %v172, 4294901760
        %v805 = vsub.f32 %v172, %v804
        %v806 = vand.u32 %v805, 4294901760
        %v807 = vsub.f32 %v805, %v806
        %v808 = vand.u32 %v807, 4294901760
        %809 = vmatpush1.msra.mxu0 %v808
        %810 = vmatprep.subr.mxu0 0.0
        %811 = vmatpush1.msra.mxu0 0.0
        %812 = vmatprep.subr.mxu0 0.0
        %813 = vmatpush1.msra.mxu0 0.0
        %814 = vmatprep.subr.mxu0 0.0
        %815 = vmatpush1.msra.mxu0 0.0
        %816 = vmatprep.subr.mxu0 0.0
        %817 = vmatpush1.msra.mxu0 0.0
        %818 = vmatprep.subr.mxu0 0.0
        %819 = vmatpush1.msra.mxu0 0.0
        %820 = vmatprep.subr.mxu0 0.0
        %821 = vmatpush1.msra.mxu0 0.0
        %822 = vmatprep.subr.mxu0 0.0
        %823 = vmatpush1.msra.mxu0 0.0
        %824 = vmatprep.subr.mxu0 0.0
        %825 = vmatpush1.msra.mxu0 0.0
        %826 = vmatprep.subr.mxu0 0.0
        %827 = vmatpush1.msra.mxu0 0.0
        %828 = vmatprep.subr.mxu0 0.0
        %829 = vmatpush1.msra.mxu0 0.0
        %830 = vmatprep.subr.mxu0 0.0
        %831 = vmatpush1.msra.mxu0 0.0
        %832 = vmatprep.subr.mxu0 0.0
        %833 = vmatpush1.msra.mxu0 0.0
        %834 = vmatprep.subr.mxu0 0.0
        %835 = vmatpush1.msra.mxu0 0.0
        %836 = vmatprep.subr.mxu0 0.0
        %837 = vmatpush1.msra.mxu0 0.0
        %838 = vmatprep.subr.mxu0 0.0
        %839 = vmatpush1.msra.mxu0 0.0
        %840 = vmatprep.subr.mxu0 0.0
        %841 = vmatpush1.msra.mxu0 0.0
        %842 = vmatprep.subr.mxu0 0.0
        %843 = vmatpush1.msra.mxu0 0.0
        %844 = vmatprep.subr.mxu0 0.0
        %845 = vmatpush1.msra.mxu0 0.0
        %846 = vmatprep.subr.mxu0 0.0
        %847 = vmatpush1.msra.mxu0 0.0
        %848 = vmatprep.subr.mxu0 0.0
        %849 = vmatpush1.msra.mxu0 0.0
        %850 = vmatprep.subr.mxu0 0.0
        %851 = vmatpush1.msra.mxu0 0.0
        %852 = vmatprep.subr.mxu0 0.0
        %853 = vmatpush1.msra.mxu0 0.0
        %854 = vmatprep.subr.mxu0 0.0
        %855 = vmatpush1.msra.mxu0 0.0
        %856 = vmatprep.subr.mxu0 0.0
        %857 = vmatpush1.msra.mxu0 0.0
        %858 = vmatprep.subr.mxu0 0.0
        %859 = vmatpush1.msra.mxu0 0.0
        %860 = vmatprep.subr.mxu0 0.0
        %861 = vmatpush1.msra.mxu0 0.0
        %862 = vmatprep.subr.mxu0 0.0
        %863 = vmatpush1.msra.mxu0 0.0
        %864 = vmatprep.subr.mxu0 0.0
        %865 = vmatpush1.msra.mxu0 0.0
        %866 = vmatprep.subr.mxu0 0.0
        %867 = vmatpush1.msra.mxu0 0.0
        %868 = vmatprep.subr.mxu0 0.0
        %869 = vmatpush1.msra.mxu0 0.0
        %870 = vmatprep.mubr.f32.mxu0 0.0
        %v871 = vand.u32 %v704, 4294901760
        %872 = vmatmul.mubr.f32.gmra.mrb[0].mxu0 %v871
        %v873 = vpop.f32.mrb[0].mxu0
        %v874 = vadd.f32 %v783, %v873
        %v875 = vpop.f32.mrb[0].mxu0
        %876 = vmatprep.mubr.f32.mxu0 0.0
        %v877 = vand.u32 %v707, 4294901760
        %878 = vmatmul.mubr.f32.gmra.mrb[0].mxu0 %v877
        %v879 = vpop.f32.mrb[0].mxu0
        %v880 = vadd.f32 %v793, %v879
        %v881 = vpop.f32.mrb[0].mxu0
        %882 = vdwg.mxu0
        %883 = vmatprep.subr.mxu0 0.0
        %v884 = vand.u32 %v171, 4294901760
        %v885 = vsub.f32 %v171, %v884
        %886 = vmatpush1.msra.mxu0 %v885
        %887 = vmatprep.subr.mxu0 0.0
        %v888 = vand.u32 %v172, 4294901760
        %v889 = vsub.f32 %v172, %v888
        %890 = vmatpush1.msra.mxu0 %v889
        %891 = vmatprep.subr.mxu0 0.0
        %892 = vmatpush1.msra.mxu0 0.0
        %893 = vmatprep.subr.mxu0 0.0
        %894 = vmatpush1.msra.mxu0 0.0
        %895 = vmatprep.subr.mxu0 0.0
        %896 = vmatpush1.msra.mxu0 0.0
        %897 = vmatprep.subr.mxu0 0.0
        %898 = vmatpush1.msra.mxu0 0.0
        %899 = vmatprep.subr.mxu0 0.0
        %900 = vmatpush1.msra.mxu0 0.0
        %901 = vmatprep.subr.mxu0 0.0
        %902 = vmatpush1.msra.mxu0 0.0
        %903 = vmatprep.subr.mxu0 0.0
        %904 = vmatpush1.msra.mxu0 0.0
        %905 = vmatprep.subr.mxu0 0.0
        %906 = vmatpush1.msra.mxu0 0.0
        %907 = vmatprep.subr.mxu0 0.0
        %908 = vmatpush1.msra.mxu0 0.0
        %909 = vmatprep.subr.mxu0 0.0
        %910 = vmatpush1.msra.mxu0 0.0
        %911 = vmatprep.subr.mxu0 0.0
        %912 = vmatpush1.msra.mxu0 0.0
        %913 = vmatprep.subr.mxu0 0.0
        %914 = vmatpush1.msra.mxu0 0.0
        %915 = vmatprep.subr.mxu0 0.0
        %916 = vmatpush1.msra.mxu0 0.0
        %917 = vmatprep.subr.mxu0 0.0
        %918 = vmatpush1.msra.mxu0 0.0
        %919 = vmatprep.subr.mxu0 0.0
        %920 = vmatpush1.msra.mxu0 0.0
        %921 = vmatprep.subr.mxu0 0.0
        %922 = vmatpush1.msra.mxu0 0.0
        %923 = vmatprep.subr.mxu0 0.0
        %924 = vmatpush1.msra.mxu0 0.0
        %925 = vmatprep.subr.mxu0 0.0
        %926 = vmatpush1.msra.mxu0 0.0
        %927 = vmatprep.subr.mxu0 0.0
        %928 = vmatpush1.msra.mxu0 0.0
        %929 = vmatprep.subr.mxu0 0.0
        %930 = vmatpush1.msra.mxu0 0.0
        %931 = vmatprep.subr.mxu0 0.0
        %932 = vmatpush1.msra.mxu0 0.0
        %933 = vmatprep.subr.mxu0 0.0
        %934 = vmatpush1.msra.mxu0 0.0
        %935 = vmatprep.subr.mxu0 0.0
        %936 = vmatpush1.msra.mxu0 0.0
        %937 = vmatprep.subr.mxu0 0.0
        %938 = vmatpush1.msra.mxu0 0.0
        %939 = vmatprep.subr.mxu0 0.0
        %940 = vmatpush1.msra.mxu0 0.0
        %941 = vmatprep.subr.mxu0 0.0
        %942 = vmatpush1.msra.mxu0 0.0
        %943 = vmatprep.subr.mxu0 0.0
        %944 = vmatpush1.msra.mxu0 0.0
        %945 = vmatprep.subr.mxu0 0.0
        %946 = vmatpush1.msra.mxu0 0.0
        %947 = vmatprep.subr.mxu0 0.0
        %948 = vmatpush1.msra.mxu0 0.0
        %949 = vmatprep.subr.mxu0 0.0
        %950 = vmatpush1.msra.mxu0 0.0
        %951 = vmatprep.mubr.f32.mxu0 0.0
        %v952 = vand.u32 %v704, 4294901760
        %v953 = vsub.f32 %v704, %v952
        %954 = vmatmul.mubr.f32.gmra.mrb[0].mxu0 %v953
        %v955 = vpop.f32.mrb[0].mxu0
        %v956 = vadd.f32 %v874, %v955
        %v957 = vpop.f32.mrb[0].mxu0
        %958 = vmatprep.mubr.f32.mxu0 0.0
        %v959 = vand.u32 %v707, 4294901760
        %v960 = vsub.f32 %v707, %v959
        %961 = vmatmul.mubr.f32.gmra.mrb[0].mxu0 %v960
        %v962 = vpop.f32.mrb[0].mxu0
        %v963 = vadd.f32 %v880, %v962
        %v964 = vpop.f32.mrb[0].mxu0
        %965 = vdwg.mxu0
        %966 = vmatprep.subr.mxu0 0.0
        %v967 = vand.u32 %v171, 4294901760
        %968 = vmatpush1.msra.mxu0 %v967
        %969 = vmatprep.subr.mxu0 0.0
        %v970 = vand.u32 %v172, 4294901760
        %971 = vmatpush1.msra.mxu0 %v970
        %972 = vmatprep.subr.mxu0 0.0
        %973 = vmatpush1.msra.mxu0 0.0
        %974 = vmatprep.subr.mxu0 0.0
        %975 = vmatpush1.msra.mxu0 0.0
        %976 = vmatprep.subr.mxu0 0.0
        %977 = vmatpush1.msra.mxu0 0.0
        %978 = vmatprep.subr.mxu0 0.0
        %979 = vmatpush1.msra.mxu0 0.0
        %980 = vmatprep.subr.mxu0 0.0
        %981 = vmatpush1.msra.mxu0 0.0
        %982 = vmatprep.subr.mxu0 0.0
        %983 = vmatpush1.msra.mxu0 0.0
        %984 = vmatprep.subr.mxu0 0.0
        %985 = vmatpush1.msra.mxu0 0.0
        %986 = vmatprep.subr.mxu0 0.0
        %987 = vmatpush1.msra.mxu0 0.0
        %988 = vmatprep.subr.mxu0 0.0
        %989 = vmatpush1.msra.mxu0 0.0
        %990 = vmatprep.subr.mxu0 0.0
        %991 = vmatpush1.msra.mxu0 0.0
        %992 = vmatprep.subr.mxu0 0.0
        %993 = vmatpush1.msra.mxu0 0.0
        %994 = vmatprep.subr.mxu0 0.0
        %995 = vmatpush1.msra.mxu0 0.0
        %996 = vmatprep.subr.mxu0 0.0
        %997 = vmatpush1.msra.mxu0 0.0
        %998 = vmatprep.subr.mxu0 0.0
        %999 = vmatpush1.msra.mxu0 0.0
        %1000 = vmatprep.subr.mxu0 0.0
        %1001 = vmatpush1.msra.mxu0 0.0
        %1002 = vmatprep.subr.mxu0 0.0
        %1003 = vmatpush1.msra.mxu0 0.0
        %1004 = vmatprep.subr.mxu0 0.0
        %1005 = vmatpush1.msra.mxu0 0.0
        %1006 = vmatprep.subr.mxu0 0.0
        %1007 = vmatpush1.msra.mxu0 0.0
        %1008 = vmatprep.subr.mxu0 0.0
        %1009 = vmatpush1.msra.mxu0 0.0
        %1010 = vmatprep.subr.mxu0 0.0
        %1011 = vmatpush1.msra.mxu0 0.0
        %1012 = vmatprep.subr.mxu0 0.0
        %1013 = vmatpush1.msra.mxu0 0.0
        %1014 = vmatprep.subr.mxu0 0.0
        %1015 = vmatpush1.msra.mxu0 0.0
        %1016 = vmatprep.subr.mxu0 0.0
        %1017 = vmatpush1.msra.mxu0 0.0
        %1018 = vmatprep.subr.mxu0 0.0
        %1019 = vmatpush1.msra.mxu0 0.0
        %1020 = vmatprep.subr.mxu0 0.0
        %1021 = vmatpush1.msra.mxu0 0.0
        %1022 = vmatprep.subr.mxu0 0.0
        %1023 = vmatpush1.msra.mxu0 0.0
        %1024 = vmatprep.subr.mxu0 0.0
        %1025 = vmatpush1.msra.mxu0 0.0
        %1026 = vmatprep.subr.mxu0 0.0
        %1027 = vmatpush1.msra.mxu0 0.0
        %1028 = vmatprep.subr.mxu0 0.0
        %1029 = vmatpush1.msra.mxu0 0.0
        %1030 = vmatprep.subr.mxu0 0.0
        %1031 = vmatpush1.msra.mxu0 0.0
        %1032 = vmatprep.mubr.f32.mxu0 0.0
        %v1033 = vand.u32 %v704, 4294901760
        %v1034 = vsub.f32 %v704, %v1033
        %v1035 = vand.u32 %v1034, 4294901760
        %1036 = vmatmul.mubr.f32.gmra.mrb[0].mxu0 %v1035
        %v1037 = vpop.f32.mrb[0].mxu0
        %v1038 = vadd.f32 %v956, %v1037
        %v1039 = vpop.f32.mrb[0].mxu0
        %1040 = vmatprep.mubr.f32.mxu0 0.0
        %v1041 = vand.u32 %v707, 4294901760
        %v1042 = vsub.f32 %v707, %v1041
        %v1043 = vand.u32 %v1042, 4294901760
        %1044 = vmatmul.mubr.f32.gmra.mrb[0].mxu0 %v1043
        %v1045 = vpop.f32.mrb[0].mxu0
        %v1046 = vadd.f32 %v963, %v1045
        %v1047 = vpop.f32.mrb[0].mxu0
        %1048 = vdwg.mxu0
        %1049 = vmatprep.subr.mxu0 0.0
        %v1050 = vand.u32 %v171, 4294901760
        %v1051 = vsub.f32 %v171, %v1050
        %v1052 = vand.u32 %v1051, 4294901760
        %1053 = vmatpush1.msra.mxu0 %v1052
        %1054 = vmatprep.subr.mxu0 0.0
        %v1055 = vand.u32 %v172, 4294901760
        %v1056 = vsub.f32 %v172, %v1055
        %v1057 = vand.u32 %v1056, 4294901760
        %1058 = vmatpush1.msra.mxu0 %v1057
        %1059 = vmatprep.subr.mxu0 0.0
        %1060 = vmatpush1.msra.mxu0 0.0
        %1061 = vmatprep.subr.mxu0 0.0
        %1062 = vmatpush1.msra.mxu0 0.0
        %1063 = vmatprep.subr.mxu0 0.0
        %1064 = vmatpush1.msra.mxu0 0.0
        %1065 = vmatprep.subr.mxu0 0.0
        %1066 = vmatpush1.msra.mxu0 0.0
        %1067 = vmatprep.subr.mxu0 0.0
        %1068 = vmatpush1.msra.mxu0 0.0
        %1069 = vmatprep.subr.mxu0 0.0
        %1070 = vmatpush1.msra.mxu0 0.0
        %1071 = vmatprep.subr.mxu0 0.0
        %1072 = vmatpush1.msra.mxu0 0.0
        %1073 = vmatprep.subr.mxu0 0.0
        %1074 = vmatpush1.msra.mxu0 0.0
        %1075 = vmatprep.subr.mxu0 0.0
        %1076 = vmatpush1.msra.mxu0 0.0
        %1077 = vmatprep.subr.mxu0 0.0
        %1078 = vmatpush1.msra.mxu0 0.0
        %1079 = vmatprep.subr.mxu0 0.0
        %1080 = vmatpush1.msra.mxu0 0.0
        %1081 = vmatprep.subr.mxu0 0.0
        %1082 = vmatpush1.msra.mxu0 0.0
        %1083 = vmatprep.subr.mxu0 0.0
        %1084 = vmatpush1.msra.mxu0 0.0
        %1085 = vmatprep.subr.mxu0 0.0
        %1086 = vmatpush1.msra.mxu0 0.0
        %1087 = vmatprep.subr.mxu0 0.0
        %1088 = vmatpush1.msra.mxu0 0.0
        %1089 = vmatprep.subr.mxu0 0.0
        %1090 = vmatpush1.msra.mxu0 0.0
        %1091 = vmatprep.subr.mxu0 0.0
        %1092 = vmatpush1.msra.mxu0 0.0
        %1093 = vmatprep.subr.mxu0 0.0
        %1094 = vmatpush1.msra.mxu0 0.0
        %1095 = vmatprep.subr.mxu0 0.0
        %1096 = vmatpush1.msra.mxu0 0.0
        %1097 = vmatprep.subr.mxu0 0.0
        %1098 = vmatpush1.msra.mxu0 0.0
        %1099 = vmatprep.subr.mxu0 0.0
        %1100 = vmatpush1.msra.mxu0 0.0
        %1101 = vmatprep.subr.mxu0 0.0
        %1102 = vmatpush1.msra.mxu0 0.0
        %1103 = vmatprep.subr.mxu0 0.0
        %1104 = vmatpush1.msra.mxu0 0.0
        %1105 = vmatprep.subr.mxu0 0.0
        %1106 = vmatpush1.msra.mxu0 0.0
        %1107 = vmatprep.subr.mxu0 0.0
        %1108 = vmatpush1.msra.mxu0 0.0
        %1109 = vmatprep.subr.mxu0 0.0
        %1110 = vmatpush1.msra.mxu0 0.0
        %1111 = vmatprep.subr.mxu0 0.0
        %1112 = vmatpush1.msra.mxu0 0.0
        %1113 = vmatprep.subr.mxu0 0.0
        %1114 = vmatpush1.msra.mxu0 0.0
        %1115 = vmatprep.subr.mxu0 0.0
        %1116 = vmatpush1.msra.mxu0 0.0
        %1117 = vmatprep.subr.mxu0 0.0
        %1118 = vmatpush1.msra.mxu0 0.0
        %1119 = vmatprep.mubr.f32.mxu0 0.0
        %v1120 = vand.u32 %v704, 4294901760
        %1121 = vmatmul.mubr.f32.gmra.mrb[0].mxu0 %v1120
        %v1122 = vpop.f32.mrb[0].mxu0
        %v1123 = vadd.f32 %v1038, %v1122
        %v1124 = vpop.f32.mrb[0].mxu0
        %1125 = vmatprep.mubr.f32.mxu0 0.0
        %v1126 = vand.u32 %v707, 4294901760
        %1127 = vmatmul.mubr.f32.gmra.mrb[0].mxu0 %v1126
        %v1128 = vpop.f32.mrb[0].mxu0
        %v1129 = vadd.f32 %v1046, %v1128
        %v1130 = vpop.f32.mrb[0].mxu0
        %1131 = vdwg.mxu0
        %1132 = vmatprep.subr.mxu0 0.0
        %v1133 = vand.u32 %v171, 4294901760
        %1134 = vmatpush1.msra.mxu0 %v1133
        %1135 = vmatprep.subr.mxu0 0.0
        %v1136 = vand.u32 %v172, 4294901760
        %1137 = vmatpush1.msra.mxu0 %v1136
        %1138 = vmatprep.subr.mxu0 0.0
        %1139 = vmatpush1.msra.mxu0 0.0
        %1140 = vmatprep.subr.mxu0 0.0
        %1141 = vmatpush1.msra.mxu0 0.0
        %1142 = vmatprep.subr.mxu0 0.0
        %1143 = vmatpush1.msra.mxu0 0.0
        %1144 = vmatprep.subr.mxu0 0.0
        %1145 = vmatpush1.msra.mxu0 0.0
        %1146 = vmatprep.subr.mxu0 0.0
        %1147 = vmatpush1.msra.mxu0 0.0
        %1148 = vmatprep.subr.mxu0 0.0
        %1149 = vmatpush1.msra.mxu0 0.0
        %1150 = vmatprep.subr.mxu0 0.0
        %1151 = vmatpush1.msra.mxu0 0.0
        %1152 = vmatprep.subr.mxu0 0.0
        %1153 = vmatpush1.msra.mxu0 0.0
        %1154 = vmatprep.subr.mxu0 0.0
        %1155 = vmatpush1.msra.mxu0 0.0
        %1156 = vmatprep.subr.mxu0 0.0
        %1157 = vmatpush1.msra.mxu0 0.0
        %1158 = vmatprep.subr.mxu0 0.0
        %1159 = vmatpush1.msra.mxu0 0.0
        %1160 = vmatprep.subr.mxu0 0.0
        %1161 = vmatpush1.msra.mxu0 0.0
        %1162 = vmatprep.subr.mxu0 0.0
        %1163 = vmatpush1.msra.mxu0 0.0
        %1164 = vmatprep.subr.mxu0 0.0
        %1165 = vmatpush1.msra.mxu0 0.0
        %1166 = vmatprep.subr.mxu0 0.0
        %1167 = vmatpush1.msra.mxu0 0.0
        %1168 = vmatprep.subr.mxu0 0.0
        %1169 = vmatpush1.msra.mxu0 0.0
        %1170 = vmatprep.subr.mxu0 0.0
        %1171 = vmatpush1.msra.mxu0 0.0
        %1172 = vmatprep.subr.mxu0 0.0
        %1173 = vmatpush1.msra.mxu0 0.0
        %1174 = vmatprep.subr.mxu0 0.0
        %1175 = vmatpush1.msra.mxu0 0.0
        %1176 = vmatprep.subr.mxu0 0.0
        %1177 = vmatpush1.msra.mxu0 0.0
        %1178 = vmatprep.subr.mxu0 0.0
        %1179 = vmatpush1.msra.mxu0 0.0
        %1180 = vmatprep.subr.mxu0 0.0
        %1181 = vmatpush1.msra.mxu0 0.0
        %1182 = vmatprep.subr.mxu0 0.0
        %1183 = vmatpush1.msra.mxu0 0.0
        %1184 = vmatprep.subr.mxu0 0.0
        %1185 = vmatpush1.msra.mxu0 0.0
        %1186 = vmatprep.subr.mxu0 0.0
        %1187 = vmatpush1.msra.mxu0 0.0
        %1188 = vmatprep.subr.mxu0 0.0
        %1189 = vmatpush1.msra.mxu0 0.0
        %1190 = vmatprep.subr.mxu0 0.0
        %1191 = vmatpush1.msra.mxu0 0.0
        %1192 = vmatprep.subr.mxu0 0.0
        %1193 = vmatpush1.msra.mxu0 0.0
        %1194 = vmatprep.subr.mxu0 0.0
        %1195 = vmatpush1.msra.mxu0 0.0
        %1196 = vmatprep.subr.mxu0 0.0
        %1197 = vmatpush1.msra.mxu0 0.0
        %1198 = vmatprep.mubr.f32.mxu0 0.0
        %v1199 = vand.u32 %v704, 4294901760
        %1200 = vmatmul.mubr.f32.gmra.mrb[0].mxu0 %v1199
        %v1201 = vpop.f32.mrb[0].mxu0
        %v1202 = vadd.f32 %v1123, %v1201
        %v1203 = vpop.f32.mrb[0].mxu0
        %1204 = vmatprep.mubr.f32.mxu0 0.0
        %v1205 = vand.u32 %v707, 4294901760
        %1206 = vmatmul.mubr.f32.gmra.mrb[0].mxu0 %v1205
        %v1207 = vpop.f32.mrb[0].mxu0
        %v1208 = vadd.f32 %v1129, %v1207
        %v1209 = vpop.f32.mrb[0].mxu0
        %1210 = vdwg.mxu0
        %s1211 = scalar_lea.vmem %s153, 16 [#allocation5]
        %1212 = vst.msk [vmem:[%s1211] sm:$0xff] %vm685, %v1202
        %1213 = vst.msk [vmem:[%s1211 + $0x20] sm:$0xff] %vm685, %v1208
        %1216 = vrot.lane.b32.xlu0 %v1202, 120
        %v1217 = vpop.permute.xlu0 %1216
        %1218 = vrot.lane.b32.xlu0 %v1208, 120
        %v1219 = vpop.permute.xlu0 %1218
        %s1222 = scalar_lea.vmem %s153, 24 [#allocation5]
        %1223 = vst.msk [vmem:[%s1222] sm:$0xff] %vm685, %v1217
        %1224 = vst.msk [vmem:[%s1222 + $0x20] sm:$0xff] %vm685, %v1219
        %s1225 = sand.u32 %s68, 1
        %s1226 = scalar_lea.sflag [#allocation4], %s1225
        %s1227 = sand.u32 %s68, 1
        %s1228 = smul.addr %s1227, 64
        %s1229 = scalar_lea.vmem [#allocation5], %s1228
        // Predicated region
        $region29: #{tpu_custom_call.1} parent=23 // pred_check
          %p1230 = pneg %p78
        $region30: #{tpu_custom_call.1} parent=23 // pred_check_branch
          %1232 = sbr.rel (%p1230) target = $region32
        $region31: #{tpu_custom_call.1} parent=23 // pred_region
          %s1233 = smul.u32 2, %s23
          %s1235 = ssub.s32 1024, 1024
          %1236 = vsyncadd %s1226, %s1235
          %s1237 = smul.addr %s1233, 4
          %s1238 = smul.addr %s22, 16
          %s1239 = sadd.s32 %s1237, %s1238
          %s1240 = smul.addr %s1239, 128
          %s1241 = scalar_lea.hbm %s1, %s1240
          %s1242 = sshll.u32 %s1229, 4
          %s1243 = int_to_ptr.vmem [resolvable:$true] %s1242
          %1248 = dma.vmem_to_hbm [thread:$0]  %s1243, 1024, %s1241, %s1226, 128, 128, 8
        $region32: #{tpu_custom_call.1} parent=23 // pred_fallthru
          _
      $region24: #{tpu_custom_call.1} parent=5 // pred_fallthru
        _
      %p1249 = scmp.le.s32.totalorder 2, %s13
      // Predicated region
      $region33: #{tpu_custom_call.1} parent=5 // pred_check
        %p1250 = pneg %p1249
      $region34: #{tpu_custom_call.1} parent=5 // pred_check_branch
        %1252 = sbr.rel (%p1250) target = $region36
      $region35: #{tpu_custom_call.1} parent=5 // pred_region
        %s1253 = ssub.s32 %s13, 2
        // Predicated region
        $region37: #{tpu_custom_call.1} parent=35 // pred_check
          %p1254 = pneg %p84
        $region38: #{tpu_custom_call.1} parent=35 // pred_check_branch
          %1256 = sbr.rel (%p1254) target = $region40
        $region39: #{tpu_custom_call.1} parent=35 // pred_region
          %s1257 = sand.u32 %s69, 1
          %s1258 = scalar_lea.sflag [#allocation4], %s1257
          %s1259 = sand.u32 %s69, 1
          %s1260 = smul.addr %s1259, 64
          %s1261 = scalar_lea.vmem [#allocation5], %s1260
          %1262 = dma.done %s1258, 1024
        $region40: #{tpu_custom_call.1} parent=35 // pred_fallthru
          _
      $region36: #{tpu_custom_call.1} parent=5 // pred_fallthru
        _
    $region6: #{tpu_custom_call.1} parent=1 // loop_footer
      %s17 = sadd.s32 1, %s13
    $region7: #{tpu_custom_call.1} parent=1 // loop_footer_branch
      %12 = sbr.rel target = $region3
    $region8: #{tpu_custom_call.1} parent=1 // loop_exit
      _
    %1263 = vsyncpa [#allocation3], 1
    %s1264 = scalar_lea.sflag [#allocation3], 1
    %1265 = vsyncpa %s1264, 1
    %1266 = vsyncpa [#allocation4], 1
    %s1267 = scalar_lea.sflag [#allocation4], 1
    %1268 = vsyncpa %s1267, 1

</llo_original>
